<compile_context>
chip_gen: v6e
topology: v6e:2x2x1
jax: 0.10.0
libtpu: 0.0.40
codegen_flags: <defaults>
</compile_context>

<pallas_src>
import functools

import jax
import jax.numpy as jnp
from jax import lax
from jax.experimental import pallas as pl
from jax.experimental.pallas import tpu as pltpu

ENC_LOGIT_INIT_SCALE = 0.1

_LANE = 128
_SUBLANE = 8


def _round_up(x, m):
    return ((x + m - 1) // m) * m


def _encoder_kernel(x_ref, w_ref, b_ref, o_ref, *, normalization, dout):
    # MXU matmul + bias (f32 accumulate).
    logits = jnp.dot(x_ref[...], w_ref[...], preferred_element_type=jnp.float32)
    logits = logits + b_ref[...].astype(jnp.float32)

    dout_pad = logits.shape[-1]

    if normalization == "von Mises-Fisher":
        # Zero-padded output columns contribute exactly 0 to the sum of squares,
        # so no lane mask is needed.  max(sumsq, 1e-24) == max(||out||, 1e-12)**2,
        # matching torch.nn.functional.normalize.
        sumsq = jnp.sum(logits * logits, axis=-1, keepdims=True)
        sumsq = jnp.maximum(sumsq, 1e-24)
        r = lax.rsqrt(sumsq)                       # EUP slot
        r = r * (1.5 - 0.5 * sumsq * r * r)        # one Newton step ([tile,1], cheap)
        out = logits * r
    elif normalization == "softmax":
        if dout != dout_pad:
            lane = lax.broadcasted_iota(jnp.int32, logits.shape, 1)
            logits = jnp.where(lane < dout, logits, -1e30)  # padded lanes -> exp ~ 0
        m = jnp.max(logits, axis=-1, keepdims=True)
        e = jnp.exp(logits - m)
        d = jnp.sum(e, axis=-1, keepdims=True)
        r = pl.reciprocal(d, approx=True)          # EUP slot
        r = r * (2.0 - d * r)                      # one Newton step -> ~f32 accuracy
        out = e * r
    else:
        raise NotImplementedError(normalization)

    o_ref[...] = out.astype(o_ref.dtype)


def normalized_linear_encoder(x, weight_t, bias, *, normalization, batch_tile=256):
    """x: [B, Din] f32; weight_t: [Din, Dout] f32 (PyTorch weight transposed); bias: [Dout] f32."""
    B, Din = x.shape
    Din_w, Dout = weight_t.shape
    assert Din_w == Din

    # Lane-dense output: pad Dout to a multiple of 128 (zero columns / zero bias).
    Dout_pad = _round_up(Dout, _LANE)
    if Dout_pad != Dout:
        weight_t = jnp.pad(weight_t, ((0, 0), (0, Dout_pad - Dout)))
        bias = jnp.pad(bias, (0, Dout_pad - Dout))
    bias2d = bias.reshape(1, Dout_pad)

    # Batch tile: multiple of 8, no larger than the (padded) batch, capped so
    # double-buffered x/out tiles + the resident weight fit ~24 MiB VMEM.
    tile = max(_SUBLANE, min(batch_tile, _round_up(B, _SUBLANE)))
    tile = _round_up(tile, _SUBLANE)
    vmem_budget = 24 * 1024 * 1024
    weight_bytes = 2 * Din * Dout_pad * 4 + 2 * Dout_pad * 4  # double-buffered W + bias
    per_row_bytes = 2 * (Din + Dout_pad) * 4                  # double-buffered x + out rows
    max_tile = max(
        _SUBLANE,
        ((vmem_budget - weight_bytes) // per_row_bytes) // _SUBLANE * _SUBLANE,
    )
    tile = min(tile, max_tile)
    # TODO(synk): if Din*Dout ever grows so large the weight itself blows VMEM,
    # add a K-tiling grid axis with a VMEM accumulator; unnecessary at encoder sizes.

    # Pad batch to a tile multiple instead of asserting divisibility.
    B_pad = _round_up(B, tile)
    x_p = jnp.pad(x, ((0, B_pad - B), (0, 0))) if B_pad != B else x

    kernel = functools.partial(_encoder_kernel, normalization=normalization, dout=Dout)

    out = pl.pallas_call(
        kernel,
        out_shape=jax.ShapeDtypeStruct((B_pad, Dout_pad), x.dtype),
        grid_spec=pltpu.PrefetchScalarGridSpec(
            num_scalar_prefetch=0,
            grid=(B_pad // tile,),
            in_specs=[
                pl.BlockSpec((tile, Din), lambda i: (i, 0)),       # x tile (streamed)
                pl.BlockSpec((Din, Dout_pad), lambda i: (0, 0)),   # full weight (resident)
                pl.BlockSpec((1, Dout_pad), lambda i: (0, 0)),     # bias (broadcast)
            ],
            out_specs=pl.BlockSpec((tile, Dout_pad), lambda i: (i, 0)),
        ),
        compiler_params=pltpu.CompilerParams(
            dimension_semantics=("parallel",),  # batch axis shards across TCs (v7x)
        ),
    )(x_p, weight_t, bias2d)

    return out[:B, :Dout]


def _reference(x, weight_t, bias, normalization):
    out = x @ weight_t + bias
    if normalization == "von Mises-Fisher":
        norm = jnp.sqrt(jnp.sum(out * out, axis=-1, keepdims=True))
        return out / jnp.maximum(norm, 1e-12)
    elif normalization == "softmax":
        return jax.nn.softmax(out, axis=-1)
    raise NotImplementedError


if __name__ == "__main__":
    # Small shapes consistent with the module: flat features -> linear -> normalize.
    B, Din, Dout = 16, 32, 24

    key = jax.random.PRNGKey(0)
    kx, kw = jax.random.split(key)

    x = jax.random.normal(kx, (B, Din), dtype=jnp.float32)

    # Deterministic init matching the module: weight ~ U(-0.1, 0.1), bias = 0.
    # PyTorch weight is [Dout, Din]; we store its transpose [Din, Dout].
    weight = jax.random.uniform(
        kw, (Dout, Din), dtype=jnp.float32,
        minval=-ENC_LOGIT_INIT_SCALE, maxval=ENC_LOGIT_INIT_SCALE,
    )
    weight_t = weight.T
    bias = jnp.zeros((Dout,), dtype=jnp.float32)

    ok = True
    for norm_mode in ("von Mises-Fisher", "softmax"):
        out = normalized_linear_encoder(x, weight_t, bias, normalization=norm_mode)
        out = jax.block_until_ready(out)
        ref = _reference(x, weight_t, bias, norm_mode)
        ok = ok and bool(jnp.allclose(out, ref, atol=1e-5, rtol=1e-5))

    if ok:
        print("KERNEL_OK")
    else:
        print("KERNEL_MISMATCH")
</pallas_src>

<mosaic_0001>
module attributes {stable_mosaic.version = 11 : i64} {
  func.func @_encoder_kernel(%arg0: i32, %arg1: memref<16x32xf32, #tpu.memory_space<vmem>>, %arg2: memref<32x128xf32, #tpu.memory_space<vmem>>, %arg3: memref<1x128xf32, #tpu.memory_space<vmem>>, %arg4: memref<16x128xf32, #tpu.memory_space<vmem>>) attributes {dimension_semantics = [#tpu.dimension_semantics<parallel>], iteration_bounds = array<i64: 1>, scalar_prefetch = 0 : i64, scratch_operands = 0 : i64, tpu.core_type = #tpu.core_type<tc>, window_params = [{transform_indices = @transform_0, window_bounds = array<i64: 16, 32>}, {pipeline_mode = #tpu.pipeline_mode<synchronous>, transform_indices = @transform_1, window_bounds = array<i64: 32, 128>}, {pipeline_mode = #tpu.pipeline_mode<synchronous>, transform_indices = @transform_2, window_bounds = array<i64: 1, 128>}, {transform_indices = @transform_3, window_bounds = array<i64: 16, 128>}]} {
    %c0 = arith.constant 0 : index
    %c0_0 = arith.constant 0 : index
    %0 = vector.load %arg1[%c0, %c0_0] : memref<16x32xf32, #tpu.memory_space<vmem>>, vector<16x32xf32>
    %c0_1 = arith.constant 0 : index
    %c0_2 = arith.constant 0 : index
    %1 = vector.load %arg2[%c0_1, %c0_2] : memref<32x128xf32, #tpu.memory_space<vmem>>, vector<32x128xf32>
    %cst = arith.constant dense<0.000000e+00> : vector<16x128xf32>
    %2 = tpu.matmul %0, %1, %cst {dimension_numbers = #tpu.dot_dimension_numbers<[1], [0], [0], [1], [0, 0, 1, 1], [], []>} : vector<16x32xf32>, vector<32x128xf32>, vector<16x128xf32> -> vector<16x128xf32>
    %c0_3 = arith.constant 0 : index
    %c0_4 = arith.constant 0 : index
    %3 = vector.load %arg3[%c0_3, %c0_4] : memref<1x128xf32, #tpu.memory_space<vmem>>, vector<1x128xf32>
    %4 = vector.broadcast %3 : vector<1x128xf32> to vector<16x128xf32>
    %5 = arith.addf %2, %4 : vector<16x128xf32>
    %6 = arith.mulf %5, %5 : vector<16x128xf32>
    %cst_5 = arith.constant dense<0.000000e+00> : vector<16xf32>
    %7 = vector.multi_reduction <add>, %6, %cst_5 [1] : vector<16x128xf32> to vector<16xf32>
    %8 = vector.shape_cast %7 : vector<16xf32> to vector<16x1xf32>
    %cst_6 = arith.constant 1.000000e-24 : f32
    %9 = vector.broadcast %cst_6 : f32 to vector<16x1xf32>
    %10 = arith.maximumf %8, %9 : vector<16x1xf32>
    %11 = math.rsqrt %10 : vector<16x1xf32>
    %cst_7 = arith.constant 5.000000e-01 : f32
    %12 = vector.broadcast %cst_7 : f32 to vector<16x1xf32>
    %13 = arith.mulf %12, %10 : vector<16x1xf32>
    %14 = arith.mulf %13, %11 : vector<16x1xf32>
    %15 = arith.mulf %14, %11 : vector<16x1xf32>
    %cst_8 = arith.constant 1.500000e+00 : f32
    %16 = vector.broadcast %cst_8 : f32 to vector<16x1xf32>
    %17 = arith.subf %16, %15 : vector<16x1xf32>
    %18 = arith.mulf %11, %17 : vector<16x1xf32>
    %19 = vector.broadcast %18 : vector<16x1xf32> to vector<16x128xf32>
    %20 = arith.mulf %5, %19 : vector<16x128xf32>
    %c0_9 = arith.constant 0 : index
    %c0_10 = arith.constant 0 : index
    %21 = vector.load %arg4[%c0_9, %c0_10] : memref<16x128xf32, #tpu.memory_space<vmem>>, vector<16x128xf32>
    tpu.vector_store %arg4[%c0_9, %c0_10], %20 {strides = array<i32>} : memref<16x128xf32, #tpu.memory_space<vmem>>, vector<16x128xf32>,
    return
  }
  func.func @transform_0(%arg0: i32) -> (i32, i32) {
    %c0_i32 = arith.constant 0 : i32
    %c0_i32_0 = arith.constant 0 : i32
    return %arg0, %c0_i32 : i32, i32
  }
  func.func @transform_1(%arg0: i32) -> (i32, i32) {
    %c0_i32 = arith.constant 0 : i32
    %c0_i32_0 = arith.constant 0 : i32
    %c0_i32_1 = arith.constant 0 : i32
    return %c0_i32, %c0_i32_0 : i32, i32
  }
  func.func @transform_2(%arg0: i32) -> (i32, i32) {
    %c0_i32 = arith.constant 0 : i32
    %c0_i32_0 = arith.constant 0 : i32
    %c0_i32_1 = arith.constant 0 : i32
    return %c0_i32, %c0_i32_0 : i32, i32
  }
  func.func @transform_3(%arg0: i32) -> (i32, i32) {
    %c0_i32 = arith.constant 0 : i32
    %c0_i32_0 = arith.constant 0 : i32
    return %arg0, %c0_i32 : i32, i32
  }
}

</mosaic_0001>

<llo_original>
// kernel: tpu_custom_call.1
$region0: #{tpu_custom_call.1}
  #allocation0 [shape = 'u32[]', space=smem, size = 0x4, offset = 0x4, fixed_abs, tag = 'smem constant byte address 0x4 - core index']
  #allocation1 [shape = 'u32[144,128]{1,0:T(1,128)}', space=vmem, size = 0x12000, scoped, tag = 'internal scratch']
  %s0 = inlined_call_operand.hbm [shape: f32[16,32], index: 0, kind: input, shape index: {}]
  %s1 = inlined_call_operand.hbm [shape: f32[32,128], index: 1, kind: input, shape index: {}]
  %s2 = inlined_call_operand.vmem [shape: f32[1,128], index: 2, kind: input, shape index: {}]
  %s3 = inlined_call_operand.hbm [shape: f32[16,128], index: 3, kind: output, shape index: {}]
  %s4 = sld [smem:[#allocation0]]
  $region30: #{tpu_custom_call.1} parent=0
    _
  %s6 = ssub.s32 1, %s4
  %s7 = scalar_select 0, %s6, %s4
  $region1: #{tpu_custom_call.1} parent=0
    #allocation2 [shape = 'u8[8192]{0}', space=vmem, size = 0x2000, scoped, tag = 'input window, operand 0, single buffered']
    #allocation3 [shape = 's32[1]{0}', space=sflag, size = 0x4, scoped, tag = 'scoped memory for tpu_custom_call.1']
    #allocation4 [shape = 's32[1]{0}', space=sflag, size = 0x4, scoped, tag = 'scoped memory for tpu_custom_call.1']
    #allocation5 [shape = 'u8[16384]{0}', space=vmem, size = 0x4000, scoped, tag = 'input window, operand 1, single buffered']
    #allocation6 [shape = 's32[1]{0}', space=sflag, size = 0x4, scoped, tag = 'scoped memory for tpu_custom_call.1']
    #allocation7 [shape = 'u8[8192]{0}', space=vmem, size = 0x2000, scoped, tag = 'output window, operand 0, single buffered']
    %8 = vsyncpa [#allocation3], 0
    %9 = vsyncpa [#allocation6], 0
    %10 = vsyncpa [#allocation4], 0
    // Predicated region
    $region2: #{tpu_custom_call.1} parent=1 // pred_check
      _
    $region3: #{tpu_custom_call.1} parent=1 // pred_check_branch
      %12 = sbr.rel (0) target = $region5
    $region4: #{tpu_custom_call.1} parent=1 // pred_region
      %s14 = ssub.s32 256, 256
      %15 = vsyncadd [#allocation3], %s14
      %s16 = sshll.u32 [#allocation2], 4
      %s17 = int_to_ptr.vmem [resolvable:$true] %s16
      %22 = dma.hbm_to_vmem [thread:$0]  %s0, 256, %s17, [#allocation3], 128, 128, 8
    $region5: #{tpu_custom_call.1} parent=1 // pred_fallthru
      _
    // Predicated region
    $region6: #{tpu_custom_call.1} parent=1 // pred_check
      _
    $region7: #{tpu_custom_call.1} parent=1 // pred_check_branch
      %24 = sbr.rel (0) target = $region9
    $region8: #{tpu_custom_call.1} parent=1 // pred_region
      %s26 = ssub.s32 512, 512
      %27 = vsyncadd [#allocation6], %s26
      %s28 = sshll.u32 [#allocation5], 4
      %s29 = int_to_ptr.vmem [resolvable:$true] %s28
      %34 = dma.hbm_to_vmem [thread:$0]  %s1, 512, %s29, [#allocation6], 128, 128, 8
    $region9: #{tpu_custom_call.1} parent=1 // pred_fallthru
      _
    // Predicated region
    $region10: #{tpu_custom_call.1} parent=1 // pred_check
      _
    $region11: #{tpu_custom_call.1} parent=1 // pred_check_branch
      %36 = sbr.rel (0) target = $region13
    $region12: #{tpu_custom_call.1} parent=1 // pred_region
      _
    $region13: #{tpu_custom_call.1} parent=1 // pred_fallthru
      _
    // Predicated region
    $region14: #{tpu_custom_call.1} parent=1 // pred_check
      _
    $region15: #{tpu_custom_call.1} parent=1 // pred_check_branch
      %38 = sbr.rel (0) target = $region17
    $region16: #{tpu_custom_call.1} parent=1 // pred_region
      %39 = dma.done [#allocation3], 256
    $region17: #{tpu_custom_call.1} parent=1 // pred_fallthru
      _
    // Predicated region
    $region18: #{tpu_custom_call.1} parent=1 // pred_check
      _
    $region19: #{tpu_custom_call.1} parent=1 // pred_check_branch
      %41 = sbr.rel (0) target = $region21
    $region20: #{tpu_custom_call.1} parent=1 // pred_region
      %42 = dma.done [#allocation6], 512
    $region21: #{tpu_custom_call.1} parent=1 // pred_fallthru
      _
    %v43 = vld [vmem:[#allocation2] sm:$0xff]
    %v44 = vld [vmem:[#allocation2 + $0x8] sm:$0xff]
    %v45 = vld [vmem:[#allocation5] sm:$0xff]
    %v46 = vld [vmem:[#allocation5 + $0x8] sm:$0xff]
    %v47 = vld [vmem:[#allocation5 + $0x10] sm:$0xff]
    %v48 = vld [vmem:[#allocation5 + $0x18] sm:$0xff]
    %v49 = vld [vmem:[%s2] sm:$0x1]
    %v51 = vlaneseq
    %v52 = vshrl.u32 %v51, 7
    %v53 = vsub.s32 0, %v52
    %v54 = vrot.slane %v49, %v53
    %vm56 = vcmask 261120
    %v58 = vsel %vm56, %v43, 0
    %v61 = vsel %vm56, %v44, 0
    %63 = vmatprep.subr.mxu0 0.0
    %64 = vmatpush1.msra.mxu0 0.0
    %65 = vmatprep.subr.mxu0 0.0
    %66 = vmatpush1.msra.mxu0 0.0
    %67 = vmatprep.subr.mxu0 0.0
    %68 = vmatpush1.msra.mxu0 0.0
    %69 = vmatprep.subr.mxu0 0.0
    %70 = vmatpush1.msra.mxu0 0.0
    %71 = vmatprep.subr.mxu0 0.0
    %72 = vmatpush1.msra.mxu0 0.0
    %73 = vmatprep.subr.mxu0 0.0
    %74 = vmatpush1.msra.mxu0 0.0
    %75 = vmatprep.subr.mxu0 0.0
    %76 = vmatpush1.msra.mxu0 0.0
    %77 = vmatprep.subr.mxu0 0.0
    %78 = vmatpush1.msra.mxu0 0.0
    %79 = vmatprep.subr.mxu0 0.0
    %80 = vmatpush1.msra.mxu0 0.0
    %81 = vmatprep.subr.mxu0 0.0
    %82 = vmatpush1.msra.mxu0 0.0
    %83 = vmatprep.subr.mxu0 0.0
    %84 = vmatpush1.msra.mxu0 0.0
    %85 = vmatprep.subr.mxu0 0.0
    %86 = vmatpush1.msra.mxu0 0.0
    %87 = vmatprep.subr.mxu0 0.0
    %88 = vmatpush1.msra.mxu0 %v48
    %89 = vmatprep.subr.mxu0 0.0
    %90 = vmatpush1.msra.mxu0 %v47
    %91 = vmatprep.subr.mxu0 0.0
    %92 = vmatpush1.msra.mxu0 %v46
    %93 = vmatprep.subr.mxu0 0.0
    %94 = vmatpush1.msra.mxu0 %v45
    %95 = vmatprep.subr.mxu0 0.0
    %96 = vmatpush2.msra.mxu0 0.0
    %97 = vmatprep.subr.mxu0 0.0
    %98 = vmatpush2.msra.mxu0 0.0
    %99 = vmatprep.subr.mxu0 0.0
    %100 = vmatpush2.msra.mxu0 0.0
    %101 = vmatprep.subr.mxu0 0.0
    %102 = vmatpush2.msra.mxu0 0.0
    %103 = vmatprep.subr.mxu0 0.0
    %104 = vmatpush2.msra.mxu0 0.0
    %105 = vmatprep.subr.mxu0 0.0
    %106 = vmatpush2.msra.mxu0 0.0
    %107 = vmatprep.subr.mxu0 0.0
    %108 = vmatpush2.msra.mxu0 0.0
    %109 = vmatprep.subr.mxu0 0.0
    %110 = vmatpush2.msra.mxu0 0.0
    %111 = vmatprep.subr.mxu0 0.0
    %112 = vmatpush2.msra.mxu0 0.0
    %113 = vmatprep.subr.mxu0 0.0
    %114 = vmatpush2.msra.mxu0 0.0
    %115 = vmatprep.subr.mxu0 0.0
    %116 = vmatpush2.msra.mxu0 0.0
    %117 = vmatprep.subr.mxu0 0.0
    %118 = vmatpush2.msra.mxu0 0.0
    %119 = vmatprep.subr.mxu0 0.0
    %120 = vmatpush2.msra.mxu0 0.0
    %121 = vmatprep.subr.mxu0 0.0
    %122 = vmatpush2.msra.mxu0 0.0
    %123 = vmatprep.subr.mxu0 0.0
    %124 = vmatpush2.msra.mxu0 0.0
    %125 = vmatprep.subr.mxu0 0.0
    %126 = vmatpush2.msra.mxu0 0.0
    %127 = vmatprep.mubr.f32.mxu0 0.0
    %128 = vmatmul.mubr.f32.gmra.mxu0 %v58
    %v129 = vpop.f32.mrf.mxu0
    %v130 = vadd.f32 %v54, %v129
    %v131 = vpop.f32.mrf.mxu0
    %132 = vmatprep.mubr.f32.mxu0 0.0
    %133 = vmatmul.mubr.f32.gmra.mxu0 %v61
    %v134 = vpop.f32.mrf.mxu0
    %v135 = vadd.f32 %v54, %v134
    %v136 = vpop.f32.mrf.mxu0
    %137 = vdwg.mxu0
    %v138 = vmul.f32 %v130, %v130
    %v139 = vmul.f32 %v135, %v135
    %140 = vadd.xlane.f32.xlu0 %v138
    %v141 = vpop.xlane.xlu0 %140
    %142 = vadd.xlane.f32.xlu0 %v139
    %v143 = vpop.xlane.xlu0 %142
    %v144 = vmax.f32 %v141, 1e-24
    %v145 = vmax.f32 %v143, 1e-24
    %v146 = vrsqrt.pop %v144
    %v147 = vrsqrt.pop %v145
    %v148 = vmul.f32 %v144, 0.5
    %v149 = vmul.f32 %v145, 0.5
    %v150 = vmul.f32 %v148, %v146
    %v151 = vmul.f32 %v149, %v147
    %v152 = vmul.f32 %v150, %v146
    %v153 = vmul.f32 %v151, %v147
    %v154 = vsub.f32 1.5, %v152
    %v155 = vsub.f32 1.5, %v153
    %v156 = vmul.f32 %v146, %v154
    %v157 = vmul.f32 %v147, %v155
    %v158 = vmul.f32 %v130, %v156
    %v159 = vmul.f32 %v135, %v157
    %160 = vst [vmem:[#allocation7] sm:$0xff] %v158
    %161 = vst [vmem:[#allocation7 + $0x8] sm:$0xff] %v159
    // Predicated region
    $region22: #{tpu_custom_call.1} parent=1 // pred_check
      _
    $region23: #{tpu_custom_call.1} parent=1 // pred_check_branch
      %163 = sbr.rel (0) target = $region25
    $region24: #{tpu_custom_call.1} parent=1 // pred_region
      %s165 = ssub.s32 256, 256
      %166 = vsyncadd [#allocation4], %s165
      %s167 = sshll.u32 [#allocation7], 4
      %s168 = int_to_ptr.vmem [resolvable:$true] %s167
      %173 = dma.vmem_to_hbm [thread:$0]  %s168, 256, %s3, [#allocation4], 128, 128, 8
    $region25: #{tpu_custom_call.1} parent=1 // pred_fallthru
      _
    // Predicated region
    $region26: #{tpu_custom_call.1} parent=1 // pred_check
      _
    $region27: #{tpu_custom_call.1} parent=1 // pred_check_branch
      %175 = sbr.rel (0) target = $region29
    $region28: #{tpu_custom_call.1} parent=1 // pred_region
      %176 = dma.done [#allocation4], 256
    $region29: #{tpu_custom_call.1} parent=1 // pred_fallthru
      _
    %177 = vsyncpa [#allocation3], 1
    %178 = vsyncpa [#allocation6], 1
    %179 = vsyncpa [#allocation4], 1

</llo_original>
